<compile_context>
chip_gen: v5e
topology: v5e:2x2
jax: 0.10.0
libtpu: 0.0.40
codegen_flags: <defaults>
</compile_context>

<pallas_src>
import jax
import jax.numpy as jnp
from jax.experimental import pallas as pl
from jax.experimental.pallas import tpu as pltpu

_LANES = 128
_TARGET_BLOCK_BYTES = 4 << 20   # ~4 MiB blocks: per-step overhead amortized
_MIN_SPLIT_BYTES = 512 << 10    # above this, force >=2 blocks (v7x: 2 TCs)
_VMEM_LIMIT_CAP = 48 << 20      # stay under v7x's 64 MiB physical VMEM


def _relu_kernel(x_ref, o_ref):
    # Pure VPU elementwise ReLU on the current VMEM tile, in native dtype.
    x = x_ref[...]
    o_ref[...] = jnp.maximum(x, jnp.zeros((), x.dtype))


def _pick_tile_rows(rows: int, sublane_mult: int, itemsize: int) -> int:
    """Choose the block height (in 128-lane rows) for the [rows, 128] slab."""
    slab_bytes = rows * _LANES * itemsize
    # Small slabs: one block == whole slab (block shape equals full array dims,
    # so no (8,128)-divisibility requirement applies).
    if rows <= 2 * sublane_mult or slab_bytes < _MIN_SPLIT_BYTES:
        return rows

    # Large slabs: lane-dense blocks of ~_TARGET_BLOCK_BYTES, but capped at
    # ~half the slab so there are always >= 2 blocks to shard across
    # TensorCores (v7x).  All candidates are sublane multiples.
    target_rows = (_TARGET_BLOCK_BYTES // (_LANES * itemsize))
    target_rows = max(sublane_mult, (target_rows // sublane_mult) * sublane_mult)
    half_rows = max(sublane_mult,
                    (pl.cdiv(rows, 2) // sublane_mult) * sublane_mult)
    target_rows = min(target_rows, half_rows)

    # Prefer an exact divisor of rows (no ragged last block -> unmasked
    # full-width stores), searching down to half the target block size.
    r = target_rows
    floor = max(sublane_mult, target_rows // 2)
    while r >= floor:
        if rows % r == 0:
            return r
        r -= sublane_mult
    # Fall back to a ragged last block; Pallas masks the OOB store.
    return target_rows


def _pallas_relu_slab(slab: jax.Array) -> jax.Array:
    """ReLU over a lane-dense [rows, 128] slab via pallas_call."""
    rows = slab.shape[0]
    dtype = slab.dtype
    itemsize = jnp.dtype(dtype).itemsize

    # Sublane packing: f32 -> 8-row tiles, bf16 -> 16, int8/fp8 -> 32.
    sublane_mult = 8 * max(1, 4 // itemsize)
    tile_rows = _pick_tile_rows(rows, sublane_mult, itemsize)
    num_blocks = pl.cdiv(rows, tile_rows)

    block_bytes = tile_rows * _LANES * itemsize
    # Double-buffered input + output (4x block) plus headroom, clamped for v7x.
    vmem_limit = min(max(4 * block_bytes + (4 << 20), 16 << 20), _VMEM_LIMIT_CAP)

    compiler_params = pltpu.CompilerParams(
        dimension_semantics=("parallel",) if num_blocks > 1 else ("arbitrary",),
        vmem_limit_bytes=vmem_limit,
    )

    return pl.pallas_call(
        _relu_kernel,
        out_shape=jax.ShapeDtypeStruct((rows, _LANES), dtype),
        grid_spec=pltpu.PrefetchScalarGridSpec(
            num_scalar_prefetch=0,
            grid=(num_blocks,),
            in_specs=[pl.BlockSpec((tile_rows, _LANES), lambda i: (i, 0))],
            out_specs=pl.BlockSpec((tile_rows, _LANES), lambda i: (i, 0)),
        ),
        compiler_params=compiler_params,
    )(slab)


@jax.jit
def pallas_relu(x: jax.Array) -> jax.Array:
    """Elementwise ReLU via a Pallas TPU kernel (arbitrary input shape)."""
    orig_shape = x.shape
    dtype = x.dtype
    zero = jnp.zeros((), dtype)

    flat = x.reshape(-1)
    n = flat.shape[0]
    main_n = (n // _LANES) * _LANES

    if main_n == 0:
        # Tiny (< 128 elems): a kernel launch buys nothing; plain VPU op.
        return jnp.maximum(x, zero)

    prefix = flat if main_n == n else flat[:main_n]
    slab = prefix.reshape(main_n // _LANES, _LANES)
    out_main = _pallas_relu_slab(slab).reshape(-1)

    if main_n == n:
        return out_main.reshape(orig_shape)

    # Sub-128 tail (< 512 bytes): handle in the wrapper, no pad/slice passes.
    tail = jnp.maximum(flat[main_n:], zero)
    return jnp.concatenate([out_main, tail]).reshape(orig_shape)


class SimpleTest:
    """JAX mirror of TorchSimpleTest: holds a parameter x, forward = relu(x)."""

    def __init__(self, shape, key):
        # torch.randn -> standard normal init, deterministic via PRNGKey.
        self.x = jax.random.normal(key, shape, dtype=jnp.float32)

    def forward(self):
        return pallas_relu(self.x)


if __name__ == "__main__":
    key = jax.random.PRNGKey(0)

    # 1) The actual module configuration: small synthetic parameter shape.
    shape = (2, 4, 16, 16)
    model = SimpleTest(shape, key)
    y = jax.block_until_ready(model.forward())
    ref = jnp.maximum(model.x, 0.0)
    assert y.shape == shape and y.dtype == jnp.float32
    assert bool(jnp.allclose(y, ref)), "Pallas ReLU mismatch (small shape)"

    # 2) Sanity-check the multi-block (>=2 blocks, 'parallel') tiled path.
    key_big = jax.random.PRNGKey(1)
    xb = jax.random.normal(key_big, (1024, 1024), dtype=jnp.float32)
    yb = jax.block_until_ready(pallas_relu(xb))
    assert bool(jnp.allclose(yb, jnp.maximum(xb, 0.0))), \
        "Pallas ReLU mismatch (tiled shape)"

    # 3) Sanity-check the misaligned-tail path (n % 128 != 0, no padding).
    key_t = jax.random.PRNGKey(2)
    xt = jax.random.normal(key_t, (2, 131), dtype=jnp.float32)
    yt = jax.block_until_ready(pallas_relu(xt))
    assert bool(jnp.allclose(yt, jnp.maximum(xt, 0.0))), \
        "Pallas ReLU mismatch (tail shape)"

    print("KERNEL_OK")
</pallas_src>

<mosaic_0001>
module attributes {stable_mosaic.version = 11 : i64} {
  func.func @_relu_kernel(%arg0: i32, %arg1: memref<16x128xf32, #tpu.memory_space<vmem>>, %arg2: memref<16x128xf32, #tpu.memory_space<vmem>>) attributes {dimension_semantics = [#tpu.dimension_semantics<arbitrary>], iteration_bounds = array<i64: 1>, scalar_prefetch = 0 : i64, scratch_operands = 0 : i64, tpu.core_type = #tpu.core_type<tc>, window_params = [{transform_indices = @transform_0, window_bounds = array<i64: 16, 128>}, {transform_indices = @transform_1, window_bounds = array<i64: 16, 128>}]} {
    %c0 = arith.constant 0 : index
    %c0_0 = arith.constant 0 : index
    %0 = vector.load %arg1[%c0, %c0_0] : memref<16x128xf32, #tpu.memory_space<vmem>>, vector<16x128xf32>
    %cst = arith.constant 0.000000e+00 : f32
    %1 = vector.broadcast %cst : f32 to vector<16x128xf32>
    %2 = arith.maximumf %0, %1 : vector<16x128xf32>
    %c0_1 = arith.constant 0 : index
    %c0_2 = arith.constant 0 : index
    %3 = vector.load %arg2[%c0_1, %c0_2] : memref<16x128xf32, #tpu.memory_space<vmem>>, vector<16x128xf32>
    tpu.vector_store %arg2[%c0_1, %c0_2], %2 {strides = array<i32>} : memref<16x128xf32, #tpu.memory_space<vmem>>, vector<16x128xf32>,
    return
  }
  func.func @transform_0(%arg0: i32) -> (i32, i32) {
    %c0_i32 = arith.constant 0 : i32
    %c0_i32_0 = arith.constant 0 : i32
    return %arg0, %c0_i32 : i32, i32
  }
  func.func @transform_1(%arg0: i32) -> (i32, i32) {
    %c0_i32 = arith.constant 0 : i32
    %c0_i32_0 = arith.constant 0 : i32
    return %arg0, %c0_i32 : i32, i32
  }
}

</mosaic_0001>

<llo_original>
// kernel: pallas_relu.1
$region0: #{pallas_relu.1}
  #allocation0 [shape = 'u32[]', space=smem, size = 0x4, offset = 0x4, fixed_abs, tag = 'smem constant byte address 0x4 - core index']
  #allocation1 [shape = 'u32[72,128]{1,0:T(1,128)}', space=vmem, size = 0x9000, scoped, tag = 'internal scratch']
  %s0 = inlined_call_operand.vmem [shape: f32[16,128], index: 0, kind: input, shape index: {}]
  %s1 = inlined_call_operand.vmem [shape: f32[16,128], index: 1, kind: output, shape index: {}]
  %s2 = sld [smem:[#allocation0]]
  $region14: #{pallas_relu.1} parent=0
    _
  %s4 = ssub.s32 1, %s2
  %s5 = scalar_select 0, %s4, %s2
  // Predicated region
  $region2: #{pallas_relu.1} parent=0 // pred_check
    _
  $region3: #{pallas_relu.1} parent=0 // pred_check_branch
    %7 = sbr.rel (0) target = $region5
  $region4: #{pallas_relu.1} parent=0 // pred_region
    _
  $region5: #{pallas_relu.1} parent=0 // pred_fallthru
    _
  %v8 = vld [vmem:[%s0] sm:$0xff]
  %v9 = vld [vmem:[%s0 + $0x8] sm:$0xff]
  %v10 = vmax.f32 %v8, 0.0
  %v11 = vmax.f32 %v9, 0.0
  %12 = vst [vmem:[%s1] sm:$0xff] %v10
  %13 = vst [vmem:[%s1 + $0x8] sm:$0xff] %v11
  // Predicated region
  $region6: #{pallas_relu.1} parent=0 // pred_check
    _
  $region7: #{pallas_relu.1} parent=0 // pred_check_branch
    %15 = sbr.rel (0) target = $region9
  $region8: #{pallas_relu.1} parent=0 // pred_region
    _
  $region9: #{pallas_relu.1} parent=0 // pred_fallthru
    _
  // Predicated region
  $region10: #{pallas_relu.1} parent=0 // pred_check
    _
  $region11: #{pallas_relu.1} parent=0 // pred_check_branch
    %17 = sbr.rel (0) target = $region13
  $region12: #{pallas_relu.1} parent=0 // pred_region
    _
  $region13: #{pallas_relu.1} parent=0 // pred_fallthru
    _

</llo_original>
